<compile_context>
chip_gen: v7x
topology: tpu7x:2x2x1
jax: 0.10.0
libtpu: 0.0.40
codegen_flags: <defaults>
</compile_context>

<pallas_src>
import functools
import operator

import jax
import jax.numpy as jnp
from jax.experimental import pallas as pl
from jax.experimental.pallas import tpu as pltpu

FLOAT = 2
INT = 0
LONG = 1


def cast_type(var, dtype):
    # JAX analogue of the PyTorch cast_type helper (CPU/GPU distinction moot).
    if dtype == INT:
        return var.astype(jnp.int32)
    elif dtype == LONG:
        # TODO(synk): int64 is disabled by default on TPU; int32 is enough for
        # dialog lengths / token ids but would truncate true 64-bit values.
        return var.astype(jnp.int32)
    elif dtype == FLOAT:
        return var.astype(jnp.float32)
    else:
        raise ValueError("Unknown dtype")


# ---------------------------------------------------------------------------
# Kernel 1: valid_loss -- total_loss = sum_k loss_k (elementwise over K terms)
# K terms are passed as K separate VMEM tiles; tiled over rows so BlockSpec
# double-buffers and overlaps the K input DMAs with the VPU adds.
# ---------------------------------------------------------------------------
_VMEM_BUDGET_BYTES = 12 * 1024 * 1024   # fits v5e's 16 MiB default scoped VMEM
_TILE_ROW_CAP = 512                     # ~85% of HBM roofline for elementwise tiles
_PALLAS_MIN_ELEMS = 8 * 128 * 8         # below ~8 vregs, XLA's fused add wins


def _make_sum_kernel(num_terms):
    def kernel(*refs):
        in_refs = refs[:num_terms]
        out_ref = refs[num_terms]
        acc = in_refs[0][...]
        for r in in_refs[1:]:
            acc = acc + r[...]
        out_ref[...] = acc
    return kernel


def _pick_tile_rows(M, N, K):
    # (K inputs + 1 output) x 2 pipeline buffers x (tm * N * 4B) <= budget.
    per_row_bytes = (K + 1) * 2 * N * 4
    tm = max(_VMEM_BUDGET_BYTES // per_row_bytes, 8)
    tm = min(tm, _TILE_ROW_CAP, M)
    tm = max((tm // 8) * 8, 8)
    return M if tm >= M else tm


def valid_loss(loss_dict):
    """Sum all non-None loss terms elementwise (matches `total_loss += l`)."""
    terms = [cast_type(jnp.asarray(l), FLOAT)
             for l in loss_dict.values() if l is not None]
    assert terms, "need at least one loss term"

    same_2d = all(t.ndim == 2 and t.shape == terms[0].shape for t in terms)
    if (not same_2d) or terms[0].size < _PALLAS_MIN_ELEMS:
        # Scalars / tiny / ragged-shaped losses (the common LaRL case): plain
        # JAX — kernel launch + HBM round-trip would dominate.
        return functools.reduce(operator.add, terms, jnp.float32(0.0))

    M, N = terms[0].shape
    K = len(terms)
    tm = _pick_tile_rows(M, N, K)

    return pl.pallas_call(
        _make_sum_kernel(K),
        out_shape=jax.ShapeDtypeStruct((M, N), jnp.float32),
        grid_spec=pltpu.PrefetchScalarGridSpec(
            num_scalar_prefetch=0,
            grid=(pl.cdiv(M, tm),),
            in_specs=[pl.BlockSpec((tm, N), lambda i: (i, 0)) for _ in range(K)],
            out_specs=pl.BlockSpec((tm, N), lambda i: (i, 0)),
        ),
        compiler_params=pltpu.CompilerParams(
            dimension_semantics=("parallel",)),
    )(*terms)


def model_sel_loss(loss_dict):
    return valid_loss(loss_dict)


# ---------------------------------------------------------------------------
# Kernel 2: extract_short_ctx -- out[b, :] = context[b, context_lens[b]-1, :]
# Context stays in HBM; 8 batch rows are gathered per grid step via manual
# DMAs into an (8, S) VMEM scratch, then written with one aligned store.
# ---------------------------------------------------------------------------
_GATHER_ROWS = 8   # batch rows per grid step: (8, S)-aligned, unmasked stores


def _make_gather_kernel(rows, B, T):
    def kernel(lens_ref, ctx_hbm, out_ref, buf, sems):
        base = pl.program_id(0) * rows
        copies = []
        for r in range(rows):                        # static unroll
            b = jnp.minimum(base + r, B - 1)         # clamp partial last block
            t = jnp.clip(lens_ref[b] - 1, 0, T - 1)  # no runtime bounds checks
            cp = pltpu.make_async_copy(
                ctx_hbm.at[b, pl.ds(t, 1)],          # (1, S) row in HBM
                buf.at[pl.ds(r, 1)],                 # (1, S) row in VMEM
                sems.at[r])
            cp.start()
            copies.append(cp)
        for cp in copies:
            cp.wait()
        out_ref[...] = buf[...]
    return kernel


def extract_short_ctx(context, context_lens, backward_size=1):
    """context: (B, T, S), context_lens: (B,) int -> (B, S)."""
    B, T, S = context.shape
    lens = context_lens.astype(jnp.int32)
    rows = _GATHER_ROWS if B >= _GATHER_ROWS else B  # full-dim block if B < 8

    out = pl.pallas_call(
        _make_gather_kernel(rows, B, T),
        out_shape=jax.ShapeDtypeStruct((B, S), context.dtype),
        grid_spec=pltpu.PrefetchScalarGridSpec(
            num_scalar_prefetch=1,
            grid=(pl.cdiv(B, rows),),
            in_specs=[pl.BlockSpec(memory_space=pl.ANY)],   # raw HBM ref
            out_specs=pl.BlockSpec((rows, S), lambda g, lens_ref: (g, 0)),
            scratch_shapes=[
                pltpu.VMEM((rows, S), context.dtype),
                pltpu.SemaphoreType.DMA((rows,)),
            ],
        ),
        compiler_params=pltpu.CompilerParams(
            dimension_semantics=("parallel",)),
    )(lens, context)
    # TODO(synk): in production, fuse this gather into the consumer kernel's
    # index_map (scalar-prefetched lens) to skip the standalone (B,S) HBM write.
    return out


# ---------------------------------------------------------------------------
# BaseModel wrapper (forward itself is NotImplemented in the reference module)
# ---------------------------------------------------------------------------
class BaseModel:
    def __init__(self, config=None):
        self.config = config
        self.kl_w = 0.0

    def np2var(self, inputs, dtype):
        if inputs is None:
            return None
        return cast_type(jnp.asarray(inputs), dtype)

    def forward(self, *inputs):
        # TODO(synk): reference forward() raises NotImplementedError; nothing to lower.
        raise NotImplementedError

    def valid_loss(self, loss, batch_cnt=None):
        return valid_loss(loss)

    def model_sel_loss(self, loss, batch_cnt=None):
        return self.valid_loss(loss, batch_cnt)

    def extract_short_ctx(self, context, context_lens, backward_size=1):
        return extract_short_ctx(context, context_lens, backward_size)

    # TODO(synk): flatten_context is ragged, data-dependent host-side list
    # manipulation (numpy in the reference); no clean Pallas equivalent.


if __name__ == "__main__":
    key = jax.random.PRNGKey(0)
    k1, k2, k3, k4, k5 = jax.random.split(key, 5)

    model = BaseModel()

    # ---- valid_loss / model_sel_loss (Pallas tiled path) ----
    M, N = 1024, 128
    loss_dict = {
        "nll": jax.random.normal(k1, (M, N), jnp.float32),
        "kl": jax.random.normal(k2, (M, N), jnp.float32),
        "none_term": None,                                   # skipped, as in PyTorch
        "aux": jax.random.normal(k3, (M, N), jnp.float32),
    }
    total = jax.block_until_ready(model.valid_loss(loss_dict))
    ref = loss_dict["nll"] + loss_dict["kl"] + loss_dict["aux"]
    assert jnp.allclose(total, ref, atol=1e-5), "valid_loss mismatch"

    sel = jax.block_until_ready(model.model_sel_loss(loss_dict))
    assert jnp.allclose(sel, ref, atol=1e-5), "model_sel_loss mismatch"

    # ---- valid_loss scalar fallback (the common LaRL case) ----
    scalar_losses = {"nll": jnp.float32(1.5), "kl": jnp.float32(0.25), "pi": None}
    s = jax.block_until_ready(model.valid_loss(scalar_losses))
    assert jnp.allclose(s, 1.75), "scalar valid_loss mismatch"

    # ---- extract_short_ctx, B < 8 (single full-dim block) ----
    B, T, S = 2, 5, 128
    context = jax.random.randint(k4, (B, T, S), 0, 1000, dtype=jnp.int32)
    context_lens = jnp.array([3, 5], dtype=jnp.int32)
    short_ctx = jax.block_until_ready(model.extract_short_ctx(context, context_lens))
    ref_ctx = context[jnp.arange(B), context_lens - 1]
    assert short_ctx.shape == (B, S)
    assert jnp.array_equal(short_ctx, ref_ctx), "extract_short_ctx mismatch (B=2)"

    # ---- extract_short_ctx, B not a multiple of 8 (partial last block) ----
    B2, T2, S2 = 10, 6, 256
    context2 = jax.random.randint(k5, (B2, T2, S2), 0, 1000, dtype=jnp.int32)
    context_lens2 = jnp.array([1, 2, 3, 4, 5, 6, 6, 5, 4, 3], dtype=jnp.int32)
    short_ctx2 = jax.block_until_ready(model.extract_short_ctx(context2, context_lens2))
    ref_ctx2 = context2[jnp.arange(B2), context_lens2 - 1]
    assert short_ctx2.shape == (B2, S2)
    assert jnp.array_equal(short_ctx2, ref_ctx2), "extract_short_ctx mismatch (B=10)"

    print("KERNEL_OK")
</pallas_src>

<mosaic_0001>
module attributes {stable_mosaic.version = 11 : i64} {
  func.func @kernel(%arg0: i32, %arg1: memref<512x128xf32, #tpu.memory_space<vmem>>, %arg2: memref<512x128xf32, #tpu.memory_space<vmem>>, %arg3: memref<512x128xf32, #tpu.memory_space<vmem>>, %arg4: memref<512x128xf32, #tpu.memory_space<vmem>>) attributes {dimension_semantics = [#tpu.dimension_semantics<parallel>], iteration_bounds = array<i64: 2>, scalar_prefetch = 0 : i64, scratch_operands = 0 : i64, tpu.core_type = #tpu.core_type<tc>, window_params = [{transform_indices = @transform_0, window_bounds = array<i64: 512, 128>}, {transform_indices = @transform_1, window_bounds = array<i64: 512, 128>}, {transform_indices = @transform_2, window_bounds = array<i64: 512, 128>}, {transform_indices = @transform_3, window_bounds = array<i64: 512, 128>}]} {
    %c0 = arith.constant 0 : index
    %c0_0 = arith.constant 0 : index
    %0 = vector.load %arg1[%c0, %c0_0] : memref<512x128xf32, #tpu.memory_space<vmem>>, vector<512x128xf32>
    %c0_1 = arith.constant 0 : index
    %c0_2 = arith.constant 0 : index
    %1 = vector.load %arg2[%c0_1, %c0_2] : memref<512x128xf32, #tpu.memory_space<vmem>>, vector<512x128xf32>
    %2 = arith.addf %0, %1 : vector<512x128xf32>
    %c0_3 = arith.constant 0 : index
    %c0_4 = arith.constant 0 : index
    %3 = vector.load %arg3[%c0_3, %c0_4] : memref<512x128xf32, #tpu.memory_space<vmem>>, vector<512x128xf32>
    %4 = arith.addf %2, %3 : vector<512x128xf32>
    %c0_5 = arith.constant 0 : index
    %c0_6 = arith.constant 0 : index
    %5 = vector.load %arg4[%c0_5, %c0_6] : memref<512x128xf32, #tpu.memory_space<vmem>>, vector<512x128xf32>
    tpu.vector_store %arg4[%c0_5, %c0_6], %4 {strides = array<i32>} : memref<512x128xf32, #tpu.memory_space<vmem>>, vector<512x128xf32>,
    return
  }
  func.func @transform_0(%arg0: i32) -> (i32, i32) {
    %c0_i32 = arith.constant 0 : i32
    %c0_i32_0 = arith.constant 0 : i32
    return %arg0, %c0_i32 : i32, i32
  }
  func.func @transform_1(%arg0: i32) -> (i32, i32) {
    %c0_i32 = arith.constant 0 : i32
    %c0_i32_0 = arith.constant 0 : i32
    return %arg0, %c0_i32 : i32, i32
  }
  func.func @transform_2(%arg0: i32) -> (i32, i32) {
    %c0_i32 = arith.constant 0 : i32
    %c0_i32_0 = arith.constant 0 : i32
    return %arg0, %c0_i32 : i32, i32
  }
  func.func @transform_3(%arg0: i32) -> (i32, i32) {
    %c0_i32 = arith.constant 0 : i32
    %c0_i32_0 = arith.constant 0 : i32
    return %arg0, %c0_i32 : i32, i32
  }
}

</mosaic_0001>

<llo_original>
// kernel: tpu_custom_call.1
$region0: #{tpu_custom_call.1}
  #allocation0 [shape = 'u32[]', space=smem, size = 0x4, offset = 0x4, fixed_abs, tag = 'smem constant byte address 0x4 - core index']
  #allocation1 [shape = 'u32[144,128]{1,0:T(1,128)}', space=vmem, size = 0x12000, scoped, tag = 'internal scratch']
  %s0 = inlined_call_operand.hbm [shape: f32[1024,128], index: 0, kind: input, shape index: {}]
  %s1 = inlined_call_operand.hbm [shape: f32[1024,128], index: 1, kind: input, shape index: {}]
  %s2 = inlined_call_operand.hbm [shape: f32[1024,128], index: 2, kind: input, shape index: {}]
  %s3 = inlined_call_operand.hbm [shape: f32[1024,128], index: 3, kind: output, shape index: {}]
  %s4 = sld [smem:[#allocation0]]
  $region57: #{tpu_custom_call.1} parent=0
    _
  %s6 = ssub.s32 1, %s4
  %s7 = scalar_select 0, %s6, %s4
  $region1: #{tpu_custom_call.1} parent=0
    #allocation2 [shape = 'u8[524288]{0}', space=vmem, size = 0x80000, scoped, tag = 'input window, operand 0']
    #allocation3 [shape = 's32[2]{0}', space=sflag, size = 0x8, scoped, tag = 'scoped memory for tpu_custom_call.1']
    #allocation4 [shape = 's32[2]{0}', space=sflag, size = 0x8, scoped, tag = 'scoped memory for tpu_custom_call.1']
    #allocation5 [shape = 'u8[524288]{0}', space=vmem, size = 0x80000, scoped, tag = 'input window, operand 1']
    #allocation6 [shape = 's32[2]{0}', space=sflag, size = 0x8, scoped, tag = 'scoped memory for tpu_custom_call.1']
    #allocation7 [shape = 'u8[524288]{0}', space=vmem, size = 0x80000, scoped, tag = 'input window, operand 2']
    #allocation8 [shape = 'u8[524288]{0}', space=vmem, size = 0x80000, scoped, tag = 'output window, operand 0']
    %8 = vsyncpa [#allocation3], 0
    %s9 = scalar_lea.sflag [#allocation3], 1
    %10 = vsyncpa %s9, 0
    %11 = vsyncpa [#allocation6], 0
    %s12 = scalar_lea.sflag [#allocation6], 1
    %13 = vsyncpa %s12, 0
    %14 = vsyncpa [#allocation4], 0
    %s15 = scalar_lea.sflag [#allocation4], 1
    %16 = vsyncpa %s15, 0
    loop: start=0, step=1, limit=4
    $region2: #{tpu_custom_call.1} parent=1 // loop_pre_header
      _
    $region3: #{tpu_custom_call.1} parent=1 // loop_header
      %s18 = sphi 0, %s22
      %p19 = scmp.ge.s32.totalorder %s18, 4
      %s28 = sphi 0, %s30
      %s31 = sphi 0, %s28
      %s32 = sphi 0, %s31
      %s48 = sphi 0, %s32
      %s54 = sphi 0, %s56
      %s57 = sphi 0, %s54
      %s58 = sphi 0, %s57
      %s74 = sphi 0, %s58
      %s80 = sphi 0, %s82
      %s83 = sphi 0, %s80
      %s84 = sphi 0, %s83
      %s100 = sphi 0, %s84
      %s106 = sphi 0, %s108
      %s109 = sphi 0, %s106
      %s110 = sphi 0, %s109
      %s126 = sphi 0, %s110
    $region4: #{tpu_custom_call.1} parent=1 // loop_header_branch
      %21 = sbr.rel (%p19) target = $region8
    $region5: #{tpu_custom_call.1} parent=1 // loop_body
      %s23 = ssub.s32 %s18, 1
      %s24 = ssub.s32 %s18, 2
      %s25 = sadd.s32 %s18, 1
      %s26 = ssub.s32 %s18, %s25
      %p27 = scmp.eq.s32.totalorder %s26, 0
      %s29 = sadd.s32 %s28, 1
      %s30 = scalar_select %p27, %s28, %s29
      %p33 = pneg %p27
      %p34 = scmp.eq.s32.totalorder %s18, 1
      %p35 = por %p33, %p34
      %p36 = scmp.ne.s32.totalorder %s28, %s31
      %p37 = scmp.eq.s32.totalorder %s18, 0
      %p38 = por %p36, %p37
      %p39 = scmp.ne.s32.totalorder %s28, %s31
      %p40 = scmp.eq.s32.totalorder %s23, 1
      %p41 = por %p39, %p40
      %p42 = scmp.ne.s32.totalorder %s31, %s32
      %p43 = scmp.eq.s32.totalorder %s23, 0
      %p44 = por %p42, %p43
      %p45 = scmp.ne.s32.totalorder %s31, %s32
      %p46 = scmp.eq.s32.totalorder %s24, 1
      %p47 = por %p45, %p46
      %p49 = scmp.ne.s32.totalorder %s32, %s48
      %p50 = scmp.eq.s32.totalorder %s24, 0
      %p51 = por %p49, %p50
      %s52 = ssub.s32 %s18, %s25
      %p53 = scmp.eq.s32.totalorder %s52, 0
      %s55 = sadd.s32 %s54, 1
      %s56 = scalar_select %p53, %s54, %s55
      %p59 = pneg %p53
      %p60 = scmp.eq.s32.totalorder %s18, 1
      %p61 = por %p59, %p60
      %p62 = scmp.ne.s32.totalorder %s54, %s57
      %p63 = scmp.eq.s32.totalorder %s18, 0
      %p64 = por %p62, %p63
      %p65 = scmp.ne.s32.totalorder %s54, %s57
      %p66 = scmp.eq.s32.totalorder %s23, 1
      %p67 = por %p65, %p66
      %p68 = scmp.ne.s32.totalorder %s57, %s58
      %p69 = scmp.eq.s32.totalorder %s23, 0
      %p70 = por %p68, %p69
      %p71 = scmp.ne.s32.totalorder %s57, %s58
      %p72 = scmp.eq.s32.totalorder %s24, 1
      %p73 = por %p71, %p72
      %p75 = scmp.ne.s32.totalorder %s58, %s74
      %p76 = scmp.eq.s32.totalorder %s24, 0
      %p77 = por %p75, %p76
      %s78 = ssub.s32 %s18, %s25
      %p79 = scmp.eq.s32.totalorder %s78, 0
      %s81 = sadd.s32 %s80, 1
      %s82 = scalar_select %p79, %s80, %s81
      %p85 = pneg %p79
      %p86 = scmp.eq.s32.totalorder %s18, 1
      %p87 = por %p85, %p86
      %p88 = scmp.ne.s32.totalorder %s80, %s83
      %p89 = scmp.eq.s32.totalorder %s18, 0
      %p90 = por %p88, %p89
      %p91 = scmp.ne.s32.totalorder %s80, %s83
      %p92 = scmp.eq.s32.totalorder %s23, 1
      %p93 = por %p91, %p92
      %p94 = scmp.ne.s32.totalorder %s83, %s84
      %p95 = scmp.eq.s32.totalorder %s23, 0
      %p96 = por %p94, %p95
      %p97 = scmp.ne.s32.totalorder %s83, %s84
      %p98 = scmp.eq.s32.totalorder %s24, 1
      %p99 = por %p97, %p98
      %p101 = scmp.ne.s32.totalorder %s84, %s100
      %p102 = scmp.eq.s32.totalorder %s24, 0
      %p103 = por %p101, %p102
      %s104 = ssub.s32 %s18, %s25
      %p105 = scmp.eq.s32.totalorder %s104, 0
      %s107 = sadd.s32 %s106, 1
      %s108 = scalar_select %p105, %s106, %s107
      %p111 = pneg %p105
      %p112 = scmp.eq.s32.totalorder %s18, 1
      %p113 = por %p111, %p112
      %p114 = scmp.ne.s32.totalorder %s106, %s109
      %p115 = scmp.eq.s32.totalorder %s18, 0
      %p116 = por %p114, %p115
      %p117 = scmp.ne.s32.totalorder %s106, %s109
      %p118 = scmp.eq.s32.totalorder %s23, 1
      %p119 = por %p117, %p118
      %p120 = scmp.ne.s32.totalorder %s109, %s110
      %p121 = scmp.eq.s32.totalorder %s23, 0
      %p122 = por %p120, %p121
      %p123 = scmp.ne.s32.totalorder %s109, %s110
      %p124 = scmp.eq.s32.totalorder %s24, 1
      %p125 = por %p123, %p124
      %p127 = scmp.ne.s32.totalorder %s110, %s126
      %p128 = scmp.eq.s32.totalorder %s24, 0
      %p129 = por %p127, %p128
      %p130 = scmp.le.s32.totalorder 1, %s18
      %p131 = scmp.lt.s32.totalorder %s18, 3
      %p132 = pnand %p130, %p131
      %p133 = pneg %p132
      // Predicated region
      $region9: #{tpu_custom_call.1} parent=5 // pred_check
        _
      $region10: #{tpu_custom_call.1} parent=5 // pred_check_branch
        %135 = sbr.rel (%p132) target = $region12
      $region11: #{tpu_custom_call.1} parent=5 // pred_region
        %s136 = ssub.s32 %s18, 1
      $region12: #{tpu_custom_call.1} parent=5 // pred_fallthru
        _
      %p137 = scmp.lt.s32.totalorder %s18, 2
      // Predicated region
      $region13: #{tpu_custom_call.1} parent=5 // pred_check
        %p138 = pneg %p137
      $region14: #{tpu_custom_call.1} parent=5 // pred_check_branch
        %140 = sbr.rel (%p138) target = $region16
      $region15: #{tpu_custom_call.1} parent=5 // pred_region
        // Predicated region
        $region17: #{tpu_custom_call.1} parent=15 // pred_check
          %p141 = pneg %p38
        $region18: #{tpu_custom_call.1} parent=15 // pred_check_branch
          %143 = sbr.rel (%p141) target = $region20
        $region19: #{tpu_custom_call.1} parent=15 // pred_region
          %s144 = sand.u32 %s28, 1
          %s145 = scalar_lea.sflag [#allocation3], %s144
          %s146 = sand.u32 %s28, 1
          %s147 = smul.addr %s146, 512
          %s148 = scalar_lea.vmem [#allocation2], %s147
          %s149 = smul.u32 64, %s18
          %s151 = ssub.s32 8192, 8192
          %152 = vsyncadd %s145, %s151
          %s153 = smul.addr %s149, 128
          %s154 = scalar_lea.hbm %s0, %s153
          %s155 = sshll.u32 %s148, 4
          %s156 = int_to_ptr.vmem [resolvable:$true] %s155
          %161 = dma.hbm_to_vmem [thread:$0]  %s154, 8192, %s156, %s145, 128, 128, 8
        $region20: #{tpu_custom_call.1} parent=15 // pred_fallthru
          _
        // Predicated region
        $region21: #{tpu_custom_call.1} parent=15 // pred_check
          %p162 = pneg %p64
        $region22: #{tpu_custom_call.1} parent=15 // pred_check_branch
          %164 = sbr.rel (%p162) target = $region24
        $region23: #{tpu_custom_call.1} parent=15 // pred_region
          %s165 = sand.u32 %s18, 1
          %s166 = scalar_lea.sflag [#allocation6], %s165
          %s167 = sand.u32 %s54, 1
          %s168 = smul.addr %s167, 512
          %s169 = scalar_lea.vmem [#allocation5], %s168
          %s170 = smul.u32 64, %s18
          %s172 = ssub.s32 8192, 8192
          %173 = vsyncadd %s166, %s172
          %s174 = smul.addr %s170, 128
          %s175 = scalar_lea.hbm %s1, %s174
          %s176 = sshll.u32 %s169, 4
          %s177 = int_to_ptr.vmem [resolvable:$true] %s176
          %182 = dma.hbm_to_vmem [thread:$0]  %s175, 8192, %s177, %s166, 128, 128, 8
        $region24: #{tpu_custom_call.1} parent=15 // pred_fallthru
          _
        // Predicated region
        $region25: #{tpu_custom_call.1} parent=15 // pred_check
          %p183 = pneg %p90
        $region26: #{tpu_custom_call.1} parent=15 // pred_check_branch
          %185 = sbr.rel (%p183) target = $region28
        $region27: #{tpu_custom_call.1} parent=15 // pred_region
          %s186 = sand.u32 %s18, 1
          %s187 = scalar_lea.sflag [#allocation6], %s186
          %s188 = sand.u32 %s80, 1
          %s189 = smul.addr %s188, 512
          %s190 = scalar_lea.vmem [#allocation7], %s189
          %s191 = smul.u32 64, %s18
          %s193 = ssub.s32 8192, 8192
          %194 = vsyncadd %s187, %s193
          %s195 = smul.addr %s191, 128
          %s196 = scalar_lea.hbm %s2, %s195
          %s197 = sshll.u32 %s190, 4
          %s198 = int_to_ptr.vmem [resolvable:$true] %s197
          %203 = dma.hbm_to_vmem [thread:$0]  %s196, 8192, %s198, %s187, 128, 128, 8
        $region28: #{tpu_custom_call.1} parent=15 // pred_fallthru
          _
      $region16: #{tpu_custom_call.1} parent=5 // pred_fallthru
        _
      %p204 = scmp.le.s32.totalorder 1, %s18
      %p205 = scmp.lt.s32.totalorder %s18, 3
      %p206 = pnand %p204, %p205
      %p207 = pneg %p206
      // Predicated region
      $region29: #{tpu_custom_call.1} parent=5 // pred_check
        _
      $region30: #{tpu_custom_call.1} parent=5 // pred_check_branch
        %209 = sbr.rel (%p206) target = $region32
      $region31: #{tpu_custom_call.1} parent=5 // pred_region
        %s210 = ssub.s32 %s18, 1
        %s211 = sand.u32 %s31, 1
        %s212 = scalar_lea.sflag [#allocation3], %s211
        %s213 = sand.u32 %s31, 1
        %s214 = smul.addr %s213, 512
        %s215 = scalar_lea.vmem [#allocation2], %s214
        // Predicated region
        $region33: #{tpu_custom_call.1} parent=31 // pred_check
          %p216 = pneg %p44
        $region34: #{tpu_custom_call.1} parent=31 // pred_check_branch
          %218 = sbr.rel (%p216) target = $region36
        $region35: #{tpu_custom_call.1} parent=31 // pred_region
          %219 = dma.done %s212, 8192
        $region36: #{tpu_custom_call.1} parent=31 // pred_fallthru
          _
        %s220 = sand.u32 %s23, 1
        %s221 = scalar_lea.sflag [#allocation6], %s220
        %s222 = sand.u32 %s57, 1
        %s223 = smul.addr %s222, 512
        %s224 = scalar_lea.vmem [#allocation5], %s223
        // Predicated region
        $region37: #{tpu_custom_call.1} parent=31 // pred_check
          %p225 = pneg %p70
        $region38: #{tpu_custom_call.1} parent=31 // pred_check_branch
          %227 = sbr.rel (%p225) target = $region40
        $region39: #{tpu_custom_call.1} parent=31 // pred_region
          %228 = dma.done %s221, 8192
        $region40: #{tpu_custom_call.1} parent=31 // pred_fallthru
          _
        %s229 = sand.u32 %s23, 1
        %s230 = scalar_lea.sflag [#allocation6], %s229
        %s231 = sand.u32 %s83, 1
        %s232 = smul.addr %s231, 512
        %s233 = scalar_lea.vmem [#allocation7], %s232
        // Predicated region
        $region41: #{tpu_custom_call.1} parent=31 // pred_check
          %p234 = pneg %p96
        $region42: #{tpu_custom_call.1} parent=31 // pred_check_branch
          %236 = sbr.rel (%p234) target = $region44
        $region43: #{tpu_custom_call.1} parent=31 // pred_region
          %237 = dma.done %s230, 8192
        $region44: #{tpu_custom_call.1} parent=31 // pred_fallthru
          _
        %s238 = sand.u32 %s31, 1
        %s239 = scalar_lea.sflag [#allocation3], %s238
        %s240 = sand.u32 %s31, 1
        %s241 = smul.addr %s240, 512
        %s242 = scalar_lea.vmem [#allocation2], %s241
        %p243 = pneg %p44
        %p244 = pneg %p41
        %s245 = sand.u32 %s23, 1
        %s246 = scalar_lea.sflag [#allocation6], %s245
        %s247 = sand.u32 %s57, 1
        %s248 = smul.addr %s247, 512
        %s249 = scalar_lea.vmem [#allocation5], %s248
        %p250 = pneg %p70
        %p251 = pneg %p67
        %s252 = sand.u32 %s23, 1
        %s253 = scalar_lea.sflag [#allocation6], %s252
        %s254 = sand.u32 %s83, 1
        %s255 = smul.addr %s254, 512
        %s256 = scalar_lea.vmem [#allocation7], %s255
        %p257 = pneg %p96
        %p258 = pneg %p93
        %p259 = pneg %p122
        %p260 = pneg %p119
        %s261 = sand.u32 %s109, 1
        %s262 = scalar_lea.sflag [#allocation4], %s261
        %s263 = sand.u32 %s109, 1
        %s264 = smul.addr %s263, 512
        %s265 = scalar_lea.vmem [#allocation8], %s264
        %s266 = smul.u32 64, %s23
        %s267 = smul.u32 64, %s23
        %s268 = smul.u32 64, %s23
        %s269 = smul.u32 64, %s23
        %v270 = vld [vmem:[%s215] sm:$0xff]
        %v271 = vld [vmem:[%s215 + $0x8] sm:$0xff]
        %v272 = vld [vmem:[%s215 + $0x10] sm:$0xff]
        %v273 = vld [vmem:[%s215 + $0x18] sm:$0xff]
        %v274 = vld [vmem:[%s215 + $0x20] sm:$0xff]
        %v275 = vld [vmem:[%s215 + $0x28] sm:$0xff]
        %v276 = vld [vmem:[%s215 + $0x30] sm:$0xff]
        %v277 = vld [vmem:[%s215 + $0x38] sm:$0xff]
        %v278 = vld [vmem:[%s215 + $0x40] sm:$0xff]
        %v279 = vld [vmem:[%s215 + $0x48] sm:$0xff]
        %v280 = vld [vmem:[%s215 + $0x50] sm:$0xff]
        %v281 = vld [vmem:[%s215 + $0x58] sm:$0xff]
        %v282 = vld [vmem:[%s215 + $0x60] sm:$0xff]
        %v283 = vld [vmem:[%s215 + $0x68] sm:$0xff]
        %v284 = vld [vmem:[%s215 + $0x70] sm:$0xff]
        %v285 = vld [vmem:[%s215 + $0x78] sm:$0xff]
        %v286 = vld [vmem:[%s215 + $0x80] sm:$0xff]
        %v287 = vld [vmem:[%s215 + $0x88] sm:$0xff]
        %v288 = vld [vmem:[%s215 + $0x90] sm:$0xff]
        %v289 = vld [vmem:[%s215 + $0x98] sm:$0xff]
        %v290 = vld [vmem:[%s215 + $0xa0] sm:$0xff]
        %v291 = vld [vmem:[%s215 + $0xa8] sm:$0xff]
        %v292 = vld [vmem:[%s215 + $0xb0] sm:$0xff]
        %v293 = vld [vmem:[%s215 + $0xb8] sm:$0xff]
        %v294 = vld [vmem:[%s215 + $0xc0] sm:$0xff]
        %v295 = vld [vmem:[%s215 + $0xc8] sm:$0xff]
        %v296 = vld [vmem:[%s215 + $0xd0] sm:$0xff]
        %v297 = vld [vmem:[%s215 + $0xd8] sm:$0xff]
        %v298 = vld [vmem:[%s215 + $0xe0] sm:$0xff]
        %v299 = vld [vmem:[%s215 + $0xe8] sm:$0xff]
        %v300 = vld [vmem:[%s215 + $0xf0] sm:$0xff]
        %v301 = vld [vmem:[%s215 + $0xf8] sm:$0xff]
        %v302 = vld [vmem:[%s215 + $0x100] sm:$0xff]
        %v303 = vld [vmem:[%s215 + $0x108] sm:$0xff]
        %v304 = vld [vmem:[%s215 + $0x110] sm:$0xff]
        %v305 = vld [vmem:[%s215 + $0x118] sm:$0xff]
        %v306 = vld [vmem:[%s215 + $0x120] sm:$0xff]
        %v307 = vld [vmem:[%s215 + $0x128] sm:$0xff]
        %v308 = vld [vmem:[%s215 + $0x130] sm:$0xff]
        %v309 = vld [vmem:[%s215 + $0x138] sm:$0xff]
        %v310 = vld [vmem:[%s215 + $0x140] sm:$0xff]
        %v311 = vld [vmem:[%s215 + $0x148] sm:$0xff]
        %v312 = vld [vmem:[%s215 + $0x150] sm:$0xff]
        %v313 = vld [vmem:[%s215 + $0x158] sm:$0xff]
        %v314 = vld [vmem:[%s215 + $0x160] sm:$0xff]
        %v315 = vld [vmem:[%s215 + $0x168] sm:$0xff]
        %v316 = vld [vmem:[%s215 + $0x170] sm:$0xff]
        %v317 = vld [vmem:[%s215 + $0x178] sm:$0xff]
        %v318 = vld [vmem:[%s215 + $0x180] sm:$0xff]
        %v319 = vld [vmem:[%s215 + $0x188] sm:$0xff]
        %v320 = vld [vmem:[%s215 + $0x190] sm:$0xff]
        %v321 = vld [vmem:[%s215 + $0x198] sm:$0xff]
        %v322 = vld [vmem:[%s215 + $0x1a0] sm:$0xff]
        %v323 = vld [vmem:[%s215 + $0x1a8] sm:$0xff]
        %v324 = vld [vmem:[%s215 + $0x1b0] sm:$0xff]
        %v325 = vld [vmem:[%s215 + $0x1b8] sm:$0xff]
        %v326 = vld [vmem:[%s215 + $0x1c0] sm:$0xff]
        %v327 = vld [vmem:[%s215 + $0x1c8] sm:$0xff]
        %v328 = vld [vmem:[%s215 + $0x1d0] sm:$0xff]
        %v329 = vld [vmem:[%s215 + $0x1d8] sm:$0xff]
        %v330 = vld [vmem:[%s215 + $0x1e0] sm:$0xff]
        %v331 = vld [vmem:[%s215 + $0x1e8] sm:$0xff]
        %v332 = vld [vmem:[%s215 + $0x1f0] sm:$0xff]
        %v333 = vld [vmem:[%s215 + $0x1f8] sm:$0xff]
        %v334 = vld [vmem:[%s224] sm:$0xff]
        %v335 = vld [vmem:[%s224 + $0x8] sm:$0xff]
        %v336 = vld [vmem:[%s224 + $0x10] sm:$0xff]
        %v337 = vld [vmem:[%s224 + $0x18] sm:$0xff]
        %v338 = vld [vmem:[%s224 + $0x20] sm:$0xff]
        %v339 = vld [vmem:[%s224 + $0x28] sm:$0xff]
        %v340 = vld [vmem:[%s224 + $0x30] sm:$0xff]
        %v341 = vld [vmem:[%s224 + $0x38] sm:$0xff]
        %v342 = vld [vmem:[%s224 + $0x40] sm:$0xff]
        %v343 = vld [vmem:[%s224 + $0x48] sm:$0xff]
        %v344 = vld [vmem:[%s224 + $0x50] sm:$0xff]
        %v345 = vld [vmem:[%s224 + $0x58] sm:$0xff]
        %v346 = vld [vmem:[%s224 + $0x60] sm:$0xff]
        %v347 = vld [vmem:[%s224 + $0x68] sm:$0xff]
        %v348 = vld [vmem:[%s224 + $0x70] sm:$0xff]
        %v349 = vld [vmem:[%s224 + $0x78] sm:$0xff]
        %v350 = vld [vmem:[%s224 + $0x80] sm:$0xff]
        %v351 = vld [vmem:[%s224 + $0x88] sm:$0xff]
        %v352 = vld [vmem:[%s224 + $0x90] sm:$0xff]
        %v353 = vld [vmem:[%s224 + $0x98] sm:$0xff]
        %v354 = vld [vmem:[%s224 + $0xa0] sm:$0xff]
        %v355 = vld [vmem:[%s224 + $0xa8] sm:$0xff]
        %v356 = vld [vmem:[%s224 + $0xb0] sm:$0xff]
        %v357 = vld [vmem:[%s224 + $0xb8] sm:$0xff]
        %v358 = vld [vmem:[%s224 + $0xc0] sm:$0xff]
        %v359 = vld [vmem:[%s224 + $0xc8] sm:$0xff]
        %v360 = vld [vmem:[%s224 + $0xd0] sm:$0xff]
        %v361 = vld [vmem:[%s224 + $0xd8] sm:$0xff]
        %v362 = vld [vmem:[%s224 + $0xe0] sm:$0xff]
        %v363 = vld [vmem:[%s224 + $0xe8] sm:$0xff]
        %v364 = vld [vmem:[%s224 + $0xf0] sm:$0xff]
        %v365 = vld [vmem:[%s224 + $0xf8] sm:$0xff]
        %v366 = vld [vmem:[%s224 + $0x100] sm:$0xff]
        %v367 = vld [vmem:[%s224 + $0x108] sm:$0xff]
        %v368 = vld [vmem:[%s224 + $0x110] sm:$0xff]
        %v369 = vld [vmem:[%s224 + $0x118] sm:$0xff]
        %v370 = vld [vmem:[%s224 + $0x120] sm:$0xff]
        %v371 = vld [vmem:[%s224 + $0x128] sm:$0xff]
        %v372 = vld [vmem:[%s224 + $0x130] sm:$0xff]
        %v373 = vld [vmem:[%s224 + $0x138] sm:$0xff]
        %v374 = vld [vmem:[%s224 + $0x140] sm:$0xff]
        %v375 = vld [vmem:[%s224 + $0x148] sm:$0xff]
        %v376 = vld [vmem:[%s224 + $0x150] sm:$0xff]
        %v377 = vld [vmem:[%s224 + $0x158] sm:$0xff]
        %v378 = vld [vmem:[%s224 + $0x160] sm:$0xff]
        %v379 = vld [vmem:[%s224 + $0x168] sm:$0xff]
        %v380 = vld [vmem:[%s224 + $0x170] sm:$0xff]
        %v381 = vld [vmem:[%s224 + $0x178] sm:$0xff]
        %v382 = vld [vmem:[%s224 + $0x180] sm:$0xff]
        %v383 = vld [vmem:[%s224 + $0x188] sm:$0xff]
        %v384 = vld [vmem:[%s224 + $0x190] sm:$0xff]
        %v385 = vld [vmem:[%s224 + $0x198] sm:$0xff]
        %v386 = vld [vmem:[%s224 + $0x1a0] sm:$0xff]
        %v387 = vld [vmem:[%s224 + $0x1a8] sm:$0xff]
        %v388 = vld [vmem:[%s224 + $0x1b0] sm:$0xff]
        %v389 = vld [vmem:[%s224 + $0x1b8] sm:$0xff]
        %v390 = vld [vmem:[%s224 + $0x1c0] sm:$0xff]
        %v391 = vld [vmem:[%s224 + $0x1c8] sm:$0xff]
        %v392 = vld [vmem:[%s224 + $0x1d0] sm:$0xff]
        %v393 = vld [vmem:[%s224 + $0x1d8] sm:$0xff]
        %v394 = vld [vmem:[%s224 + $0x1e0] sm:$0xff]
        %v395 = vld [vmem:[%s224 + $0x1e8] sm:$0xff]
        %v396 = vld [vmem:[%s224 + $0x1f0] sm:$0xff]
        %v397 = vld [vmem:[%s224 + $0x1f8] sm:$0xff]
        %v398 = vadd.f32 %v270, %v334
        %v399 = vadd.f32 %v271, %v335
        %v400 = vadd.f32 %v272, %v336
        %v401 = vadd.f32 %v273, %v337
        %v402 = vadd.f32 %v274, %v338
        %v403 = vadd.f32 %v275, %v339
        %v404 = vadd.f32 %v276, %v340
        %v405 = vadd.f32 %v277, %v341
        %v406 = vadd.f32 %v278, %v342
        %v407 = vadd.f32 %v279, %v343
        %v408 = vadd.f32 %v280, %v344
        %v409 = vadd.f32 %v281, %v345
        %v410 = vadd.f32 %v282, %v346
        %v411 = vadd.f32 %v283, %v347
        %v412 = vadd.f32 %v284, %v348
        %v413 = vadd.f32 %v285, %v349
        %v414 = vadd.f32 %v286, %v350
        %v415 = vadd.f32 %v287, %v351
        %v416 = vadd.f32 %v288, %v352
        %v417 = vadd.f32 %v289, %v353
        %v418 = vadd.f32 %v290, %v354
        %v419 = vadd.f32 %v291, %v355
        %v420 = vadd.f32 %v292, %v356
        %v421 = vadd.f32 %v293, %v357
        %v422 = vadd.f32 %v294, %v358
        %v423 = vadd.f32 %v295, %v359
        %v424 = vadd.f32 %v296, %v360
        %v425 = vadd.f32 %v297, %v361
        %v426 = vadd.f32 %v298, %v362
        %v427 = vadd.f32 %v299, %v363
        %v428 = vadd.f32 %v300, %v364
        %v429 = vadd.f32 %v301, %v365
        %v430 = vadd.f32 %v302, %v366
        %v431 = vadd.f32 %v303, %v367
        %v432 = vadd.f32 %v304, %v368
        %v433 = vadd.f32 %v305, %v369
        %v434 = vadd.f32 %v306, %v370
        %v435 = vadd.f32 %v307, %v371
        %v436 = vadd.f32 %v308, %v372
        %v437 = vadd.f32 %v309, %v373
        %v438 = vadd.f32 %v310, %v374
        %v439 = vadd.f32 %v311, %v375
        %v440 = vadd.f32 %v312, %v376
        %v441 = vadd.f32 %v313, %v377
        %v442 = vadd.f32 %v314, %v378
        %v443 = vadd.f32 %v315, %v379
        %v444 = vadd.f32 %v316, %v380
        %v445 = vadd.f32 %v317, %v381
        %v446 = vadd.f32 %v318, %v382
        %v447 = vadd.f32 %v319, %v383
        %v448 = vadd.f32 %v320, %v384
        %v449 = vadd.f32 %v321, %v385
        %v450 = vadd.f32 %v322, %v386
        %v451 = vadd.f32 %v323, %v387
        %v452 = vadd.f32 %v324, %v388
        %v453 = vadd.f32 %v325, %v389
        %v454 = vadd.f32 %v326, %v390
        %v455 = vadd.f32 %v327, %v391
        %v456 = vadd.f32 %v328, %v392
        %v457 = vadd.f32 %v329, %v393
        %v458 = vadd.f32 %v330, %v394
        %v459 = vadd.f32 %v331, %v395
        %v460 = vadd.f32 %v332, %v396
        %v461 = vadd.f32 %v333, %v397
        %v462 = vld [vmem:[%s233] sm:$0xff]
        %v463 = vld [vmem:[%s233 + $0x8] sm:$0xff]
        %v464 = vld [vmem:[%s233 + $0x10] sm:$0xff]
        %v465 = vld [vmem:[%s233 + $0x18] sm:$0xff]
        %v466 = vld [vmem:[%s233 + $0x20] sm:$0xff]
        %v467 = vld [vmem:[%s233 + $0x28] sm:$0xff]
        %v468 = vld [vmem:[%s233 + $0x30] sm:$0xff]
        %v469 = vld [vmem:[%s233 + $0x38] sm:$0xff]
        %v470 = vld [vmem:[%s233 + $0x40] sm:$0xff]
        %v471 = vld [vmem:[%s233 + $0x48] sm:$0xff]
        %v472 = vld [vmem:[%s233 + $0x50] sm:$0xff]
        %v473 = vld [vmem:[%s233 + $0x58] sm:$0xff]
        %v474 = vld [vmem:[%s233 + $0x60] sm:$0xff]
        %v475 = vld [vmem:[%s233 + $0x68] sm:$0xff]
        %v476 = vld [vmem:[%s233 + $0x70] sm:$0xff]
        %v477 = vld [vmem:[%s233 + $0x78] sm:$0xff]
        %v478 = vld [vmem:[%s233 + $0x80] sm:$0xff]
        %v479 = vld [vmem:[%s233 + $0x88] sm:$0xff]
        %v480 = vld [vmem:[%s233 + $0x90] sm:$0xff]
        %v481 = vld [vmem:[%s233 + $0x98] sm:$0xff]
        %v482 = vld [vmem:[%s233 + $0xa0] sm:$0xff]
        %v483 = vld [vmem:[%s233 + $0xa8] sm:$0xff]
        %v484 = vld [vmem:[%s233 + $0xb0] sm:$0xff]
        %v485 = vld [vmem:[%s233 + $0xb8] sm:$0xff]
        %v486 = vld [vmem:[%s233 + $0xc0] sm:$0xff]
        %v487 = vld [vmem:[%s233 + $0xc8] sm:$0xff]
        %v488 = vld [vmem:[%s233 + $0xd0] sm:$0xff]
        %v489 = vld [vmem:[%s233 + $0xd8] sm:$0xff]
        %v490 = vld [vmem:[%s233 + $0xe0] sm:$0xff]
        %v491 = vld [vmem:[%s233 + $0xe8] sm:$0xff]
        %v492 = vld [vmem:[%s233 + $0xf0] sm:$0xff]
        %v493 = vld [vmem:[%s233 + $0xf8] sm:$0xff]
        %v494 = vld [vmem:[%s233 + $0x100] sm:$0xff]
        %v495 = vld [vmem:[%s233 + $0x108] sm:$0xff]
        %v496 = vld [vmem:[%s233 + $0x110] sm:$0xff]
        %v497 = vld [vmem:[%s233 + $0x118] sm:$0xff]
        %v498 = vld [vmem:[%s233 + $0x120] sm:$0xff]
        %v499 = vld [vmem:[%s233 + $0x128] sm:$0xff]
        %v500 = vld [vmem:[%s233 + $0x130] sm:$0xff]
        %v501 = vld [vmem:[%s233 + $0x138] sm:$0xff]
        %v502 = vld [vmem:[%s233 + $0x140] sm:$0xff]
        %v503 = vld [vmem:[%s233 + $0x148] sm:$0xff]
        %v504 = vld [vmem:[%s233 + $0x150] sm:$0xff]
        %v505 = vld [vmem:[%s233 + $0x158] sm:$0xff]
        %v506 = vld [vmem:[%s233 + $0x160] sm:$0xff]
        %v507 = vld [vmem:[%s233 + $0x168] sm:$0xff]
        %v508 = vld [vmem:[%s233 + $0x170] sm:$0xff]
        %v509 = vld [vmem:[%s233 + $0x178] sm:$0xff]
        %v510 = vld [vmem:[%s233 + $0x180] sm:$0xff]
        %v511 = vld [vmem:[%s233 + $0x188] sm:$0xff]
        %v512 = vld [vmem:[%s233 + $0x190] sm:$0xff]
        %v513 = vld [vmem:[%s233 + $0x198] sm:$0xff]
        %v514 = vld [vmem:[%s233 + $0x1a0] sm:$0xff]
        %v515 = vld [vmem:[%s233 + $0x1a8] sm:$0xff]
        %v516 = vld [vmem:[%s233 + $0x1b0] sm:$0xff]
        %v517 = vld [vmem:[%s233 + $0x1b8] sm:$0xff]
        %v518 = vld [vmem:[%s233 + $0x1c0] sm:$0xff]
        %v519 = vld [vmem:[%s233 + $0x1c8] sm:$0xff]
        %v520 = vld [vmem:[%s233 + $0x1d0] sm:$0xff]
        %v521 = vld [vmem:[%s233 + $0x1d8] sm:$0xff]
        %v522 = vld [vmem:[%s233 + $0x1e0] sm:$0xff]
        %v523 = vld [vmem:[%s233 + $0x1e8] sm:$0xff]
        %v524 = vld [vmem:[%s233 + $0x1f0] sm:$0xff]
        %v525 = vld [vmem:[%s233 + $0x1f8] sm:$0xff]
        %v526 = vadd.f32 %v398, %v462
        %v527 = vadd.f32 %v399, %v463
        %v528 = vadd.f32 %v400, %v464
        %v529 = vadd.f32 %v401, %v465
        %v530 = vadd.f32 %v402, %v466
        %v531 = vadd.f32 %v403, %v467
        %v532 = vadd.f32 %v404, %v468
        %v533 = vadd.f32 %v405, %v469
        %v534 = vadd.f32 %v406, %v470
        %v535 = vadd.f32 %v407, %v471
        %v536 = vadd.f32 %v408, %v472
        %v537 = vadd.f32 %v409, %v473
        %v538 = vadd.f32 %v410, %v474
        %v539 = vadd.f32 %v411, %v475
        %v540 = vadd.f32 %v412, %v476
        %v541 = vadd.f32 %v413, %v477
        %v542 = vadd.f32 %v414, %v478
        %v543 = vadd.f32 %v415, %v479
        %v544 = vadd.f32 %v416, %v480
        %v545 = vadd.f32 %v417, %v481
        %v546 = vadd.f32 %v418, %v482
        %v547 = vadd.f32 %v419, %v483
        %v548 = vadd.f32 %v420, %v484
        %v549 = vadd.f32 %v421, %v485
        %v550 = vadd.f32 %v422, %v486
        %v551 = vadd.f32 %v423, %v487
        %v552 = vadd.f32 %v424, %v488
        %v553 = vadd.f32 %v425, %v489
        %v554 = vadd.f32 %v426, %v490
        %v555 = vadd.f32 %v427, %v491
        %v556 = vadd.f32 %v428, %v492
        %v557 = vadd.f32 %v429, %v493
        %v558 = vadd.f32 %v430, %v494
        %v559 = vadd.f32 %v431, %v495
        %v560 = vadd.f32 %v432, %v496
        %v561 = vadd.f32 %v433, %v497
        %v562 = vadd.f32 %v434, %v498
        %v563 = vadd.f32 %v435, %v499
        %v564 = vadd.f32 %v436, %v500
        %v565 = vadd.f32 %v437, %v501
        %v566 = vadd.f32 %v438, %v502
        %v567 = vadd.f32 %v439, %v503
        %v568 = vadd.f32 %v440, %v504
        %v569 = vadd.f32 %v441, %v505
        %v570 = vadd.f32 %v442, %v506
        %v571 = vadd.f32 %v443, %v507
        %v572 = vadd.f32 %v444, %v508
        %v573 = vadd.f32 %v445, %v509
        %v574 = vadd.f32 %v446, %v510
        %v575 = vadd.f32 %v447, %v511
        %v576 = vadd.f32 %v448, %v512
        %v577 = vadd.f32 %v449, %v513
        %v578 = vadd.f32 %v450, %v514
        %v579 = vadd.f32 %v451, %v515
        %v580 = vadd.f32 %v452, %v516
        %v581 = vadd.f32 %v453, %v517
        %v582 = vadd.f32 %v454, %v518
        %v583 = vadd.f32 %v455, %v519
        %v584 = vadd.f32 %v456, %v520
        %v585 = vadd.f32 %v457, %v521
        %v586 = vadd.f32 %v458, %v522
        %v587 = vadd.f32 %v459, %v523
        %v588 = vadd.f32 %v460, %v524
        %v589 = vadd.f32 %v461, %v525
        %590 = vst [vmem:[%s265] sm:$0xff] %v526
        %591 = vst [vmem:[%s265 + $0x8] sm:$0xff] %v527
        %592 = vst [vmem:[%s265 + $0x10] sm:$0xff] %v528
        %593 = vst [vmem:[%s265 + $0x18] sm:$0xff] %v529
        %594 = vst [vmem:[%s265 + $0x20] sm:$0xff] %v530
        %595 = vst [vmem:[%s265 + $0x28] sm:$0xff] %v531
        %596 = vst [vmem:[%s265 + $0x30] sm:$0xff] %v532
        %597 = vst [vmem:[%s265 + $0x38] sm:$0xff] %v533
        %598 = vst [vmem:[%s265 + $0x40] sm:$0xff] %v534
        %599 = vst [vmem:[%s265 + $0x48] sm:$0xff] %v535
        %600 = vst [vmem:[%s265 + $0x50] sm:$0xff] %v536
        %601 = vst [vmem:[%s265 + $0x58] sm:$0xff] %v537
        %602 = vst [vmem:[%s265 + $0x60] sm:$0xff] %v538
        %603 = vst [vmem:[%s265 + $0x68] sm:$0xff] %v539
        %604 = vst [vmem:[%s265 + $0x70] sm:$0xff] %v540
        %605 = vst [vmem:[%s265 + $0x78] sm:$0xff] %v541
        %606 = vst [vmem:[%s265 + $0x80] sm:$0xff] %v542
        %607 = vst [vmem:[%s265 + $0x88] sm:$0xff] %v543
        %608 = vst [vmem:[%s265 + $0x90] sm:$0xff] %v544
        %609 = vst [vmem:[%s265 + $0x98] sm:$0xff] %v545
        %610 = vst [vmem:[%s265 + $0xa0] sm:$0xff] %v546
        %611 = vst [vmem:[%s265 + $0xa8] sm:$0xff] %v547
        %612 = vst [vmem:[%s265 + $0xb0] sm:$0xff] %v548
        %613 = vst [vmem:[%s265 + $0xb8] sm:$0xff] %v549
        %614 = vst [vmem:[%s265 + $0xc0] sm:$0xff] %v550
        %615 = vst [vmem:[%s265 + $0xc8] sm:$0xff] %v551
        %616 = vst [vmem:[%s265 + $0xd0] sm:$0xff] %v552
        %617 = vst [vmem:[%s265 + $0xd8] sm:$0xff] %v553
        %618 = vst [vmem:[%s265 + $0xe0] sm:$0xff] %v554
        %619 = vst [vmem:[%s265 + $0xe8] sm:$0xff] %v555
        %620 = vst [vmem:[%s265 + $0xf0] sm:$0xff] %v556
        %621 = vst [vmem:[%s265 + $0xf8] sm:$0xff] %v557
        %622 = vst [vmem:[%s265 + $0x100] sm:$0xff] %v558
        %623 = vst [vmem:[%s265 + $0x108] sm:$0xff] %v559
        %624 = vst [vmem:[%s265 + $0x110] sm:$0xff] %v560
        %625 = vst [vmem:[%s265 + $0x118] sm:$0xff] %v561
        %626 = vst [vmem:[%s265 + $0x120] sm:$0xff] %v562
        %627 = vst [vmem:[%s265 + $0x128] sm:$0xff] %v563
        %628 = vst [vmem:[%s265 + $0x130] sm:$0xff] %v564
        %629 = vst [vmem:[%s265 + $0x138] sm:$0xff] %v565
        %630 = vst [vmem:[%s265 + $0x140] sm:$0xff] %v566
        %631 = vst [vmem:[%s265 + $0x148] sm:$0xff] %v567
        %632 = vst [vmem:[%s265 + $0x150] sm:$0xff] %v568
        %633 = vst [vmem:[%s265 + $0x158] sm:$0xff] %v569
        %634 = vst [vmem:[%s265 + $0x160] sm:$0xff] %v570
        %635 = vst [vmem:[%s265 + $0x168] sm:$0xff] %v571
        %636 = vst [vmem:[%s265 + $0x170] sm:$0xff] %v572
        %637 = vst [vmem:[%s265 + $0x178] sm:$0xff] %v573
        %638 = vst [vmem:[%s265 + $0x180] sm:$0xff] %v574
        %639 = vst [vmem:[%s265 + $0x188] sm:$0xff] %v575
        %640 = vst [vmem:[%s265 + $0x190] sm:$0xff] %v576
        %641 = vst [vmem:[%s265 + $0x198] sm:$0xff] %v577
        %642 = vst [vmem:[%s265 + $0x1a0] sm:$0xff] %v578
        %643 = vst [vmem:[%s265 + $0x1a8] sm:$0xff] %v579
        %644 = vst [vmem:[%s265 + $0x1b0] sm:$0xff] %v580
        %645 = vst [vmem:[%s265 + $0x1b8] sm:$0xff] %v581
        %646 = vst [vmem:[%s265 + $0x1c0] sm:$0xff] %v582
        %647 = vst [vmem:[%s265 + $0x1c8] sm:$0xff] %v583
        %648 = vst [vmem:[%s265 + $0x1d0] sm:$0xff] %v584
        %649 = vst [vmem:[%s265 + $0x1d8] sm:$0xff] %v585
        %650 = vst [vmem:[%s265 + $0x1e0] sm:$0xff] %v586
        %651 = vst [vmem:[%s265 + $0x1e8] sm:$0xff] %v587
        %652 = vst [vmem:[%s265 + $0x1f0] sm:$0xff] %v588
        %653 = vst [vmem:[%s265 + $0x1f8] sm:$0xff] %v589
        %s654 = sand.u32 %s109, 1
        %s655 = scalar_lea.sflag [#allocation4], %s654
        %s656 = sand.u32 %s109, 1
        %s657 = smul.addr %s656, 512
        %s658 = scalar_lea.vmem [#allocation8], %s657
        // Predicated region
        $region45: #{tpu_custom_call.1} parent=31 // pred_check
          %p659 = pneg %p119
        $region46: #{tpu_custom_call.1} parent=31 // pred_check_branch
          %661 = sbr.rel (%p659) target = $region48
        $region47: #{tpu_custom_call.1} parent=31 // pred_region
          %s662 = smul.u32 64, %s23
          %s664 = ssub.s32 8192, 8192
          %665 = vsyncadd %s655, %s664
          %s666 = smul.addr %s662, 128
          %s667 = scalar_lea.hbm %s3, %s666
          %s668 = sshll.u32 %s658, 4
          %s669 = int_to_ptr.vmem [resolvable:$true] %s668
          %674 = dma.vmem_to_hbm [thread:$0]  %s669, 8192, %s667, %s655, 128, 128, 8
        $region48: #{tpu_custom_call.1} parent=31 // pred_fallthru
          _
      $region32: #{tpu_custom_call.1} parent=5 // pred_fallthru
        _
      %p675 = scmp.le.s32.totalorder 2, %s18
      // Predicated region
      $region49: #{tpu_custom_call.1} parent=5 // pred_check
        %p676 = pneg %p675
      $region50: #{tpu_custom_call.1} parent=5 // pred_check_branch
        %678 = sbr.rel (%p676) target = $region52
      $region51: #{tpu_custom_call.1} parent=5 // pred_region
        %s679 = ssub.s32 %s18, 2
        // Predicated region
        $region53: #{tpu_custom_call.1} parent=51 // pred_check
          %p680 = pneg %p125
        $region54: #{tpu_custom_call.1} parent=51 // pred_check_branch
          %682 = sbr.rel (%p680) target = $region56
        $region55: #{tpu_custom_call.1} parent=51 // pred_region
          %s683 = sand.u32 %s110, 1
          %s684 = scalar_lea.sflag [#allocation4], %s683
          %s685 = sand.u32 %s110, 1
          %s686 = smul.addr %s685, 512
          %s687 = scalar_lea.vmem [#allocation8], %s686
          %688 = dma.done %s684, 8192
        $region56: #{tpu_custom_call.1} parent=51 // pred_fallthru
          _
      $region52: #{tpu_custom_call.1} parent=5 // pred_fallthru
        _
    $region6: #{tpu_custom_call.1} parent=1 // loop_footer
      %s22 = sadd.s32 1, %s18
    $region7: #{tpu_custom_call.1} parent=1 // loop_footer_branch
      %17 = sbr.rel target = $region3
    $region8: #{tpu_custom_call.1} parent=1 // loop_exit
      _
    %689 = vsyncpa [#allocation3], 1
    %s690 = scalar_lea.sflag [#allocation3], 1
    %691 = vsyncpa %s690, 1
    %692 = vsyncpa [#allocation6], 1
    %s693 = scalar_lea.sflag [#allocation6], 1
    %694 = vsyncpa %s693, 1
    %695 = vsyncpa [#allocation4], 1
    %s696 = scalar_lea.sflag [#allocation4], 1
    %697 = vsyncpa %s696, 1

</llo_original>
